<compile_context>
chip_gen: v6e
topology: v6e:2x2x1
jax: 0.10.0
libtpu: 0.0.40
codegen_flags: <defaults>
</compile_context>

<pallas_src>
import jax
import jax.numpy as jnp
from jax.experimental import pallas as pl
from jax.experimental.pallas import tpu as pltpu

# ---- small config consistent with the module ----
BATCH = 2
IN_CHANS = 4
IMG_SIZE = 16
PATCH = 4
EMBED = 32                                   # n_embd
NUM_PATCHES = (IMG_SIZE // PATCH) ** 2       # 16
FLAT = PATCH * PATCH * IN_CHANS              # 64  (flatten_dim)
SEQ = 1 + NUM_PATCHES                        # 17  (cls token + patches)


def patch_embed_kernel(patches_ref, w_ref, cls_pos_ref, pos_bias_ref, o_ref):
    """patches_ref: (B*NP, FLAT)      w_ref: (FLAT, D)
       cls_pos_ref: (1, D)   = class_embed + position_embed[0]
       pos_bias_ref: (NP, D) = position_embed[1:] + proj_bias
       o_ref: (B, SEQ, D)"""
    # Single fused MXU projection for the whole batch, f32 accumulation.
    proj = jnp.dot(patches_ref[...], w_ref[...],
                   preferred_element_type=jnp.float32)              # (B*NP, D)

    # Patch rows with (position embedding + bias) folded in.
    # 32 -> (2, 16) row split is 8-aligned, so the reshape is free re-tiling.
    body = proj.reshape(BATCH, NUM_PATCHES, EMBED) + pos_bias_ref[...][None]

    # Class-token row (position embedding already folded in), shared across batch.
    cls_rows = jnp.broadcast_to(cls_pos_ref[...][None], (BATCH, 1, EMBED))

    # Assemble in registers and emit a single aligned full-block store.
    o_ref[...] = jnp.concatenate([cls_rows, body], axis=1)          # (B, SEQ, D)


def _extract_patches(x):
    """Wrapper-side equivalent of torch unfold/contiguous/view/permute/reshape.

    x: (B, C, H, W)  ->  (B*num_patches, C*P*P)
    Per-patch feature vector is channel-major then (ph, pw), matching
    x.unfold(2,P,P).unfold(3,P,P).view(B,C,np,-1).permute(0,2,1,3).reshape(B,np,-1).
    """
    Bx, C, H, W = x.shape
    nH, nW = H // PATCH, W // PATCH
    p = x.reshape(Bx, C, nH, PATCH, nW, PATCH)      # [b, c, i, ph, j, pw]
    p = p.transpose(0, 2, 4, 1, 3, 5)               # [b, i, j, c, ph, pw]
    return p.reshape(Bx * nH * nW, C * PATCH * PATCH)


def patch_embedding(x, w, b, cls, pos):
    """x: (B, C, H, W) f32. w: (FLAT, D) pre-transposed Linear weight. b: (D,) or (1, D).
    cls: (1, D). pos: (SEQ, D). Returns (B, 1+num_patches, n_embd) f32."""
    patches = _extract_patches(x)                         # (B*NP, FLAT) = (32, 64)

    # One-time constant folding (cheap XLA ops outside the kernel).
    b2 = jnp.reshape(b, (1, EMBED))
    cls_plus_pos0 = cls + pos[0:1, :]                     # (1, D)
    pos_body_bias = pos[1:, :] + b2                       # (NP, D)

    vmem = pltpu.MemorySpace.VMEM
    return pl.pallas_call(
        patch_embed_kernel,
        out_shape=jax.ShapeDtypeStruct((BATCH, SEQ, EMBED), jnp.float32),
        in_specs=[
            pl.BlockSpec(memory_space=vmem),              # patches (whole array)
            pl.BlockSpec(memory_space=vmem),              # proj weight
            pl.BlockSpec(memory_space=vmem),              # cls + pos[0]
            pl.BlockSpec(memory_space=vmem),              # pos[1:] + bias
        ],
        out_specs=pl.BlockSpec(memory_space=vmem),
    )(patches, w, cls_plus_pos0, pos_body_bias)


def reference_patch_embed(x, w, b, cls, pos):
    """Pure-JAX reference of PatchEmbedding.forward for a sanity check."""
    patches = _extract_patches(x).reshape(BATCH, NUM_PATCHES, FLAT)
    proj = patches @ w + jnp.reshape(b, (1, EMBED))                # (B, NP, D)
    cls_b = jnp.broadcast_to(cls[None], (BATCH, 1, EMBED))         # (B, 1, D)
    return jnp.concatenate([cls_b, proj], axis=1) + pos[None]      # (B, SEQ, D)


if __name__ == "__main__":
    key = jax.random.PRNGKey(0)
    kx, kw, kb, kc, kp = jax.random.split(key, 5)

    x = jax.random.normal(kx, (BATCH, IN_CHANS, IMG_SIZE, IMG_SIZE), jnp.float32)
    # nn.Linear weight pre-transposed to (in, out); bias as (1, D).
    w = 0.02 * jax.random.normal(kw, (FLAT, EMBED), jnp.float32)
    b = 0.02 * jax.random.normal(kb, (1, EMBED), jnp.float32)
    # class_embed ~ randn (as in PyTorch); position_embed is zeros in PyTorch init,
    # made random here so the add path is actually exercised by the check.
    cls = jax.random.normal(kc, (1, EMBED), jnp.float32)
    pos = 0.02 * jax.random.normal(kp, (SEQ, EMBED), jnp.float32)

    out = patch_embedding(x, w, b, cls, pos)
    out = jax.block_until_ready(out)

    ref = reference_patch_embed(x, w, b, cls, pos)
    assert out.shape == (BATCH, SEQ, EMBED)
    err = float(jnp.max(jnp.abs(out - ref)))
    assert jnp.allclose(out, ref, atol=1e-5, rtol=1e-5), f"max err {err}"
    print("KERNEL_OK")
</pallas_src>

<mosaic_0001>
module attributes {stable_mosaic.version = 11 : i64} {
  func.func @patch_embed_kernel(%arg0: memref<32x64xf32, #tpu.memory_space<vmem>>, %arg1: memref<64x32xf32, #tpu.memory_space<vmem>>, %arg2: memref<1x32xf32, #tpu.memory_space<vmem>>, %arg3: memref<16x32xf32, #tpu.memory_space<vmem>>, %arg4: memref<2x17x32xf32, #tpu.memory_space<vmem>>) attributes {dimension_semantics = [], scalar_prefetch = 0 : i64, scratch_operands = 0 : i64, tpu.core_type = #tpu.core_type<tc>} {
    %c0 = arith.constant 0 : index
    %c0_0 = arith.constant 0 : index
    %0 = vector.load %arg0[%c0, %c0_0] : memref<32x64xf32, #tpu.memory_space<vmem>>, vector<32x64xf32>
    %c0_1 = arith.constant 0 : index
    %c0_2 = arith.constant 0 : index
    %1 = vector.load %arg1[%c0_1, %c0_2] : memref<64x32xf32, #tpu.memory_space<vmem>>, vector<64x32xf32>
    %cst = arith.constant dense<0.000000e+00> : vector<32x32xf32>
    %2 = tpu.matmul %0, %1, %cst {dimension_numbers = #tpu.dot_dimension_numbers<[1], [0], [0], [1], [0, 0, 1, 1], [], []>} : vector<32x64xf32>, vector<64x32xf32>, vector<32x32xf32> -> vector<32x32xf32>
    %3 = vector.shape_cast %2 : vector<32x32xf32> to vector<2x16x32xf32>
    %c0_3 = arith.constant 0 : index
    %c0_4 = arith.constant 0 : index
    %4 = vector.load %arg3[%c0_3, %c0_4] : memref<16x32xf32, #tpu.memory_space<vmem>>, vector<16x32xf32>
    %5 = vector.shape_cast %4 : vector<16x32xf32> to vector<1x16x32xf32>
    %6 = vector.broadcast %5 : vector<1x16x32xf32> to vector<2x16x32xf32>
    %7 = arith.addf %3, %6 : vector<2x16x32xf32>
    %c0_5 = arith.constant 0 : index
    %c0_6 = arith.constant 0 : index
    %8 = vector.load %arg2[%c0_5, %c0_6] : memref<1x32xf32, #tpu.memory_space<vmem>>, vector<1x32xf32>
    %9 = vector.shape_cast %8 : vector<1x32xf32> to vector<1x1x32xf32>
    %10 = vector.shape_cast %9 : vector<1x1x32xf32> to vector<1x1x32xf32>
    %11 = vector.broadcast %10 : vector<1x1x32xf32> to vector<2x1x32xf32>
    %12 = tpu.concatenate %11, %7 in 1 : vector<2x1x32xf32>, vector<2x16x32xf32> -> vector<2x17x32xf32>
    %c0_7 = arith.constant 0 : index
    %c0_8 = arith.constant 0 : index
    %c0_9 = arith.constant 0 : index
    %13 = vector.load %arg4[%c0_7, %c0_8, %c0_9] : memref<2x17x32xf32, #tpu.memory_space<vmem>>, vector<2x17x32xf32>
    tpu.vector_store %arg4[%c0_7, %c0_8, %c0_9], %12 {strides = array<i32>} : memref<2x17x32xf32, #tpu.memory_space<vmem>>, vector<2x17x32xf32>,
    return
  }
}

</mosaic_0001>

<llo_original>
// kernel: tpu_custom_call.1
$region0: #{tpu_custom_call.1}
  #allocation0 [shape = 'u32[]', space=smem, size = 0x4, offset = 0x4, fixed_abs, tag = 'smem constant byte address 0x4 - core index']
  #allocation1 [shape = 'u32[144,128]{1,0:T(1,128)}', space=vmem, size = 0x12000, scoped, tag = 'internal scratch']
  %s0 = inlined_call_operand.vmem [shape: f32[32,64], index: 0, kind: input, shape index: {}]
  %s1 = inlined_call_operand.vmem [shape: f32[64,32], index: 1, kind: input, shape index: {}]
  %s2 = inlined_call_operand.vmem [shape: f32[1,32], index: 2, kind: input, shape index: {}]
  %s3 = inlined_call_operand.vmem [shape: f32[16,32], index: 3, kind: input, shape index: {}]
  %s4 = inlined_call_operand.vmem [shape: f32[2,17,32], index: 4, kind: output, shape index: {}]
  %s5 = sld [smem:[#allocation0]]
  $region26: #{tpu_custom_call.1} parent=0
    _
  %s7 = ssub.s32 1, %s5
  %s8 = scalar_select 0, %s7, %s5
  // Predicated region
  $region2: #{tpu_custom_call.1} parent=0 // pred_check
    _
  $region3: #{tpu_custom_call.1} parent=0 // pred_check_branch
    %10 = sbr.rel (0) target = $region5
  $region4: #{tpu_custom_call.1} parent=0 // pred_region
    _
  $region5: #{tpu_custom_call.1} parent=0 // pred_fallthru
    _
  // Predicated region
  $region6: #{tpu_custom_call.1} parent=0 // pred_check
    _
  $region7: #{tpu_custom_call.1} parent=0 // pred_check_branch
    %12 = sbr.rel (0) target = $region9
  $region8: #{tpu_custom_call.1} parent=0 // pred_region
    _
  $region9: #{tpu_custom_call.1} parent=0 // pred_fallthru
    _
  // Predicated region
  $region10: #{tpu_custom_call.1} parent=0 // pred_check
    _
  $region11: #{tpu_custom_call.1} parent=0 // pred_check_branch
    %14 = sbr.rel (0) target = $region13
  $region12: #{tpu_custom_call.1} parent=0 // pred_region
    _
  $region13: #{tpu_custom_call.1} parent=0 // pred_fallthru
    _
  // Predicated region
  $region14: #{tpu_custom_call.1} parent=0 // pred_check
    _
  $region15: #{tpu_custom_call.1} parent=0 // pred_check_branch
    %16 = sbr.rel (0) target = $region17
  $region16: #{tpu_custom_call.1} parent=0 // pred_region
    _
  $region17: #{tpu_custom_call.1} parent=0 // pred_fallthru
    _
  %v17 = vld [vmem:[%s0] sm:$0xff]
  %v18 = vld [vmem:[%s0 + $0x8] sm:$0xff]
  %v19 = vld [vmem:[%s0 + $0x10] sm:$0xff]
  %v20 = vld [vmem:[%s0 + $0x18] sm:$0xff]
  %v21 = vld [vmem:[%s1] sm:$0xff]
  %v22 = vld [vmem:[%s1 + $0x8] sm:$0xff]
  %v23 = vld [vmem:[%s1 + $0x10] sm:$0xff]
  %v24 = vld [vmem:[%s1 + $0x18] sm:$0xff]
  %v25 = vld [vmem:[%s1 + $0x20] sm:$0xff]
  %v26 = vld [vmem:[%s1 + $0x28] sm:$0xff]
  %v27 = vld [vmem:[%s1 + $0x30] sm:$0xff]
  %v28 = vld [vmem:[%s1 + $0x38] sm:$0xff]
  %vm29 = vcmask 523264
  %v31 = vsel %vm29, %v17, 0
  %v34 = vsel %vm29, %v18, 0
  %v37 = vsel %vm29, %v19, 0
  %v40 = vsel %vm29, %v20, 0
  %42 = vmatprep.subr.mxu0 0.0
  %43 = vmatpush1.msra.mxu0 0.0
  %44 = vmatprep.subr.mxu0 0.0
  %45 = vmatpush1.msra.mxu0 0.0
  %46 = vmatprep.subr.mxu0 0.0
  %47 = vmatpush1.msra.mxu0 0.0
  %48 = vmatprep.subr.mxu0 0.0
  %49 = vmatpush1.msra.mxu0 0.0
  %50 = vmatprep.subr.mxu0 0.0
  %51 = vmatpush1.msra.mxu0 0.0
  %52 = vmatprep.subr.mxu0 0.0
  %53 = vmatpush1.msra.mxu0 0.0
  %54 = vmatprep.subr.mxu0 0.0
  %55 = vmatpush1.msra.mxu0 0.0
  %56 = vmatprep.subr.mxu0 0.0
  %57 = vmatpush1.msra.mxu0 0.0
  %58 = vmatprep.subr.mxu0 0.0
  %59 = vmatpush1.msra.mxu0 %v28
  %60 = vmatprep.subr.mxu0 0.0
  %61 = vmatpush1.msra.mxu0 %v27
  %62 = vmatprep.subr.mxu0 0.0
  %63 = vmatpush1.msra.mxu0 %v26
  %64 = vmatprep.subr.mxu0 0.0
  %65 = vmatpush1.msra.mxu0 %v25
  %66 = vmatprep.subr.mxu0 0.0
  %67 = vmatpush1.msra.mxu0 %v24
  %68 = vmatprep.subr.mxu0 0.0
  %69 = vmatpush1.msra.mxu0 %v23
  %70 = vmatprep.subr.mxu0 0.0
  %71 = vmatpush1.msra.mxu0 %v22
  %72 = vmatprep.subr.mxu0 0.0
  %73 = vmatpush1.msra.mxu0 %v21
  %74 = vmatprep.subr.mxu0 0.0
  %75 = vmatpush2.msra.mxu0 0.0
  %76 = vmatprep.subr.mxu0 0.0
  %77 = vmatpush2.msra.mxu0 0.0
  %78 = vmatprep.subr.mxu0 0.0
  %79 = vmatpush2.msra.mxu0 0.0
  %80 = vmatprep.subr.mxu0 0.0
  %81 = vmatpush2.msra.mxu0 0.0
  %82 = vmatprep.subr.mxu0 0.0
  %83 = vmatpush2.msra.mxu0 0.0
  %84 = vmatprep.subr.mxu0 0.0
  %85 = vmatpush2.msra.mxu0 0.0
  %86 = vmatprep.subr.mxu0 0.0
  %87 = vmatpush2.msra.mxu0 0.0
  %88 = vmatprep.subr.mxu0 0.0
  %89 = vmatpush2.msra.mxu0 0.0
  %90 = vmatprep.subr.mxu0 0.0
  %91 = vmatpush2.msra.mxu0 0.0
  %92 = vmatprep.subr.mxu0 0.0
  %93 = vmatpush2.msra.mxu0 0.0
  %94 = vmatprep.subr.mxu0 0.0
  %95 = vmatpush2.msra.mxu0 0.0
  %96 = vmatprep.subr.mxu0 0.0
  %97 = vmatpush2.msra.mxu0 0.0
  %98 = vmatprep.subr.mxu0 0.0
  %99 = vmatpush2.msra.mxu0 0.0
  %100 = vmatprep.subr.mxu0 0.0
  %101 = vmatpush2.msra.mxu0 0.0
  %102 = vmatprep.subr.mxu0 0.0
  %103 = vmatpush2.msra.mxu0 0.0
  %104 = vmatprep.subr.mxu0 0.0
  %105 = vmatpush2.msra.mxu0 0.0
  %106 = vmatprep.mubr.f32.mxu0 0.0
  %107 = vmatmul.mubr.f32.gmra.mxu0 %v31
  %v108 = vpop.f32.mrf.mxu0
  %v109 = vadd.f32 0.0, %v108
  %v110 = vpop.f32.mrf.mxu0
  %111 = vmatprep.mubr.f32.mxu0 0.0
  %112 = vmatmul.mubr.f32.gmra.mxu0 %v34
  %v113 = vpop.f32.mrf.mxu0
  %v114 = vadd.f32 0.0, %v113
  %v115 = vpop.f32.mrf.mxu0
  %116 = vmatprep.mubr.f32.mxu0 0.0
  %117 = vmatmul.mubr.f32.gmra.mxu0 %v37
  %v118 = vpop.f32.mrf.mxu0
  %v119 = vadd.f32 0.0, %v118
  %v120 = vpop.f32.mrf.mxu0
  %121 = vmatprep.mubr.f32.mxu0 0.0
  %122 = vmatmul.mubr.f32.gmra.mxu0 %v40
  %v123 = vpop.f32.mrf.mxu0
  %v124 = vadd.f32 0.0, %v123
  %v125 = vpop.f32.mrf.mxu0
  %126 = vdwg.mxu0
  %v127 = vld [vmem:[%s3] sm:$0xff]
  %v128 = vld [vmem:[%s3 + $0x8] sm:$0xff]
  %v129 = vadd.f32 %v109, %v127
  %v130 = vadd.f32 %v114, %v128
  %v131 = vadd.f32 %v119, %v127
  %v132 = vadd.f32 %v124, %v128
  %v133 = vld [vmem:[%s2] sm:$0x1]
  %vm138 = vcmask 1040384
  %v139 = vrot.slane %v129, 7
  %v140 = vrot.slane %v130, 7
  %v141 = vsel %vm138, %v139, %v140
  %v142 = vrot.slane %v131, 7
  %v143 = vrot.slane %v132, 7
  %v144 = vsel %vm138, %v142, %v143
  %v151 = vsel %vm138, %v133, %v139
  %v152 = vsel %vm138, %v133, %v142
  %vm153 = vcmask 261120
  %154 = vst.msk [vmem:[%s4] sm:$0xff] %vm153, %v151
  %155 = vst.msk [vmem:[%s4 + $0x8] sm:$0xff] %vm153, %v141
  %vm156 = vcmask 253952
  %157 = vst.msk [vmem:[%s4 + $0x10] sm:$0x1] %vm156, %v140
  %158 = vst.msk [vmem:[%s4 + $0x18] sm:$0xff] %vm153, %v152
  %159 = vst.msk [vmem:[%s4 + $0x20] sm:$0xff] %vm153, %v144
  %160 = vst.msk [vmem:[%s4 + $0x28] sm:$0x1] %vm156, %v143
  // Predicated region
  $region18: #{tpu_custom_call.1} parent=0 // pred_check
    _
  $region19: #{tpu_custom_call.1} parent=0 // pred_check_branch
    %162 = sbr.rel (0) target = $region21
  $region20: #{tpu_custom_call.1} parent=0 // pred_region
    _
  $region21: #{tpu_custom_call.1} parent=0 // pred_fallthru
    _
  // Predicated region
  $region22: #{tpu_custom_call.1} parent=0 // pred_check
    _
  $region23: #{tpu_custom_call.1} parent=0 // pred_check_branch
    %164 = sbr.rel (0) target = $region25
  $region24: #{tpu_custom_call.1} parent=0 // pred_region
    _
  $region25: #{tpu_custom_call.1} parent=0 // pred_fallthru
    _

</llo_original>
